<compile_context>
chip_gen: v7x
topology: tpu7x:2x2x1
jax: 0.10.0
libtpu: 0.0.40
codegen_flags: <defaults>
</compile_context>

<pallas_src>
import jax
import jax.numpy as jnp
from jax.experimental import pallas as pl
from jax.experimental.pallas import tpu as pltpu


def simplenet_kernel(w1_ref, b1_ref, w2_ref, b2_ref, x_ref, o_ref):
    # SMEM: w1_ref [3, 3] (in, out), b1_ref [3], w2_ref [3], b2_ref [1]
    # VMEM: x_ref  [3, TILE_B]  (features on sublanes, batch on lanes)
    #       o_ref  [1, TILE_B]
    x = x_ref[...]                      # [3, TILE_B] f32
    x0 = x[0:1, :]                      # [1, TILE_B]
    x1 = x[1:2, :]
    x2 = x[2:3, :]

    # Start the accumulator from the fc2 bias (one broadcast per invocation).
    y = jnp.full_like(x0, b2_ref[0])    # [1, TILE_B]

    # fc1 + ReLU + fc2, entirely on the VPU via scalar-broadcast math.
    for j in range(3):                  # static unroll over the 3 hidden units
        h = (x0 * w1_ref[0, j]
             + x1 * w1_ref[1, j]
             + x2 * w1_ref[2, j]
             + b1_ref[j])
        h = jnp.maximum(h, 0.0)         # ReLU
        y = y + w2_ref[j] * h

    o_ref[...] = y.astype(o_ref.dtype)


def simplenet_forward(x, w1, b1, w2, b2, tile_b=8192):
    """x: [B, 3] float32. Returns [B, 1] float32 (same semantics as SimpleNet)."""
    B = x.shape[0]
    x = x.astype(jnp.float32)

    # Lane-dense layout: [3, B] with the batch on the 128-wide lane axis.
    xT = x.T                                          # [3, B]

    # Pad batch up to a lane-aligned multiple of the tile size.
    b_aligned = pl.cdiv(B, 128) * 128
    tile = min(tile_b, b_aligned)
    b_padded = pl.cdiv(b_aligned, tile) * tile
    if b_padded != B:
        xT = jnp.pad(xT, ((0, 0), (0, b_padded - B)))

    grid = (b_padded // tile,)

    out_t = pl.pallas_call(
        simplenet_kernel,
        out_shape=jax.ShapeDtypeStruct((1, b_padded), jnp.float32),
        grid=grid,
        in_specs=[
            # Tiny parameter tensors -> SMEM, read as scalars in-kernel.
            pl.BlockSpec(memory_space=pltpu.MemorySpace.SMEM),  # w1 [3,3]
            pl.BlockSpec(memory_space=pltpu.MemorySpace.SMEM),  # b1 [3]
            pl.BlockSpec(memory_space=pltpu.MemorySpace.SMEM),  # w2 [3]
            pl.BlockSpec(memory_space=pltpu.MemorySpace.SMEM),  # b2 [1]
            # x stream: full feature extent (3) on sublanes, tiled batch on lanes.
            pl.BlockSpec((3, tile), lambda i: (0, i)),
        ],
        out_specs=pl.BlockSpec((1, tile), lambda i: (0, i)),
        compiler_params=pltpu.CompilerParams(
            dimension_semantics=("parallel",),  # megacore: split batch across TCs
        ),
        cost_estimate=pl.CostEstimate(
            flops=12 * b_padded,                 # ~12 MAC-ish ops per batch element
            transcendentals=0,
            bytes_accessed=4 * b_padded * (3 + 1),
        ),
    )(w1, b1, w2, b2, xT)

    # Back to the PyTorch-facing [B, 1] layout.
    return out_t[0, :B][:, None]


def make_params():
    # nn.init.constant_(..., 0.5) for all weights/biases, matching the PyTorch module.
    # PyTorch fc1.weight: [3, 3] (out, in) -> stored here as [in, out] = [3, 3]
    # PyTorch fc2.weight: [1, 3] (out, in) -> stored here flattened as [3]
    w1 = jnp.full((3, 3), 0.5, dtype=jnp.float32)
    b1 = jnp.full((3,), 0.5, dtype=jnp.float32)
    w2 = jnp.full((3,), 0.5, dtype=jnp.float32)
    b2 = jnp.full((1,), 0.5, dtype=jnp.float32)
    return w1, b1, w2, b2


if __name__ == "__main__":
    key = jax.random.PRNGKey(0)
    B = 8
    x = jax.random.normal(key, (B, 3), dtype=jnp.float32)

    w1, b1, w2, b2 = make_params()

    out = simplenet_forward(x, w1, b1, w2, b2)
    out = jax.block_until_ready(out)

    # Reference check in plain JAX (same semantics as the PyTorch forward).
    ref = jnp.maximum(x @ w1 + b1, 0.0) @ w2[:, None] + b2
    assert out.shape == (B, 1)
    assert jnp.allclose(out, ref, atol=1e-5), "mismatch vs reference"

    print("KERNEL_OK")
</pallas_src>

<mosaic_0001>
module attributes {stable_mosaic.version = 11 : i64} {
  func.func @simplenet_kernel(%arg0: i32, %arg1: memref<3x3xf32, #tpu.memory_space<smem>>, %arg2: memref<3xf32, #tpu.memory_space<smem>>, %arg3: memref<3xf32, #tpu.memory_space<smem>>, %arg4: memref<1xf32, #tpu.memory_space<smem>>, %arg5: memref<3x128xf32, #tpu.memory_space<vmem>>, %arg6: memref<1x128xf32, #tpu.memory_space<vmem>>) attributes {dimension_semantics = [#tpu.dimension_semantics<parallel>], iteration_bounds = array<i64: 1>, scalar_prefetch = 0 : i64, scratch_operands = 0 : i64, tpu.core_type = #tpu.core_type<tc>, window_params = [{transform_indices = @transform_0, window_bounds = array<i64: 3, 3>}, {transform_indices = @transform_1, window_bounds = array<i64: 3>}, {transform_indices = @transform_2, window_bounds = array<i64: 3>}, {transform_indices = @transform_3, window_bounds = array<i64: 1>}, {transform_indices = @transform_4, window_bounds = array<i64: 3, 128>}, {transform_indices = @transform_5, window_bounds = array<i64: 1, 128>}]} {
    %c0 = arith.constant 0 : index
    %c0_0 = arith.constant 0 : index
    %0 = vector.load %arg5[%c0, %c0_0] : memref<3x128xf32, #tpu.memory_space<vmem>>, vector<3x128xf32>
    %1 = vector.extract_strided_slice %0 {offsets = [0, 0], sizes = [1, 128], strides = [1, 1]} : vector<3x128xf32> to vector<1x128xf32>
    %2 = vector.extract_strided_slice %0 {offsets = [1, 0], sizes = [1, 128], strides = [1, 1]} : vector<3x128xf32> to vector<1x128xf32>
    %3 = vector.extract_strided_slice %0 {offsets = [2, 0], sizes = [1, 128], strides = [1, 1]} : vector<3x128xf32> to vector<1x128xf32>
    %c0_1 = arith.constant 0 : index
    %4 = memref.load %arg4[%c0_1] : memref<1xf32, #tpu.memory_space<smem>>
    %5 = vector.broadcast %4 : f32 to vector<1x128xf32>
    %c0_2 = arith.constant 0 : index
    %c0_3 = arith.constant 0 : index
    %6 = memref.load %arg1[%c0_2, %c0_3] : memref<3x3xf32, #tpu.memory_space<smem>>
    %7 = vector.broadcast %6 : f32 to vector<1x128xf32>
    %8 = arith.mulf %1, %7 : vector<1x128xf32>
    %c1 = arith.constant 1 : index
    %c0_4 = arith.constant 0 : index
    %9 = memref.load %arg1[%c1, %c0_4] : memref<3x3xf32, #tpu.memory_space<smem>>
    %10 = vector.broadcast %9 : f32 to vector<1x128xf32>
    %11 = arith.mulf %2, %10 : vector<1x128xf32>
    %12 = arith.addf %8, %11 : vector<1x128xf32>
    %c2 = arith.constant 2 : index
    %c0_5 = arith.constant 0 : index
    %13 = memref.load %arg1[%c2, %c0_5] : memref<3x3xf32, #tpu.memory_space<smem>>
    %14 = vector.broadcast %13 : f32 to vector<1x128xf32>
    %15 = arith.mulf %3, %14 : vector<1x128xf32>
    %16 = arith.addf %12, %15 : vector<1x128xf32>
    %c0_6 = arith.constant 0 : index
    %17 = memref.load %arg2[%c0_6] : memref<3xf32, #tpu.memory_space<smem>>
    %18 = vector.broadcast %17 : f32 to vector<1x128xf32>
    %19 = arith.addf %16, %18 : vector<1x128xf32>
    %cst = arith.constant 0.000000e+00 : f32
    %20 = vector.broadcast %cst : f32 to vector<1x128xf32>
    %21 = arith.maximumf %19, %20 : vector<1x128xf32>
    %c0_7 = arith.constant 0 : index
    %22 = memref.load %arg3[%c0_7] : memref<3xf32, #tpu.memory_space<smem>>
    %23 = vector.broadcast %22 : f32 to vector<1x128xf32>
    %24 = arith.mulf %23, %21 : vector<1x128xf32>
    %25 = arith.addf %5, %24 : vector<1x128xf32>
    %c0_8 = arith.constant 0 : index
    %c1_9 = arith.constant 1 : index
    %26 = memref.load %arg1[%c0_8, %c1_9] : memref<3x3xf32, #tpu.memory_space<smem>>
    %27 = vector.broadcast %26 : f32 to vector<1x128xf32>
    %28 = arith.mulf %1, %27 : vector<1x128xf32>
    %c1_10 = arith.constant 1 : index
    %c1_11 = arith.constant 1 : index
    %29 = memref.load %arg1[%c1_10, %c1_11] : memref<3x3xf32, #tpu.memory_space<smem>>
    %30 = vector.broadcast %29 : f32 to vector<1x128xf32>
    %31 = arith.mulf %2, %30 : vector<1x128xf32>
    %32 = arith.addf %28, %31 : vector<1x128xf32>
    %c2_12 = arith.constant 2 : index
    %c1_13 = arith.constant 1 : index
    %33 = memref.load %arg1[%c2_12, %c1_13] : memref<3x3xf32, #tpu.memory_space<smem>>
    %34 = vector.broadcast %33 : f32 to vector<1x128xf32>
    %35 = arith.mulf %3, %34 : vector<1x128xf32>
    %36 = arith.addf %32, %35 : vector<1x128xf32>
    %c1_14 = arith.constant 1 : index
    %37 = memref.load %arg2[%c1_14] : memref<3xf32, #tpu.memory_space<smem>>
    %38 = vector.broadcast %37 : f32 to vector<1x128xf32>
    %39 = arith.addf %36, %38 : vector<1x128xf32>
    %cst_15 = arith.constant 0.000000e+00 : f32
    %40 = vector.broadcast %cst_15 : f32 to vector<1x128xf32>
    %41 = arith.maximumf %39, %40 : vector<1x128xf32>
    %c1_16 = arith.constant 1 : index
    %42 = memref.load %arg3[%c1_16] : memref<3xf32, #tpu.memory_space<smem>>
    %43 = vector.broadcast %42 : f32 to vector<1x128xf32>
    %44 = arith.mulf %43, %41 : vector<1x128xf32>
    %45 = arith.addf %25, %44 : vector<1x128xf32>
    %c0_17 = arith.constant 0 : index
    %c2_18 = arith.constant 2 : index
    %46 = memref.load %arg1[%c0_17, %c2_18] : memref<3x3xf32, #tpu.memory_space<smem>>
    %47 = vector.broadcast %46 : f32 to vector<1x128xf32>
    %48 = arith.mulf %1, %47 : vector<1x128xf32>
    %c1_19 = arith.constant 1 : index
    %c2_20 = arith.constant 2 : index
    %49 = memref.load %arg1[%c1_19, %c2_20] : memref<3x3xf32, #tpu.memory_space<smem>>
    %50 = vector.broadcast %49 : f32 to vector<1x128xf32>
    %51 = arith.mulf %2, %50 : vector<1x128xf32>
    %52 = arith.addf %48, %51 : vector<1x128xf32>
    %c2_21 = arith.constant 2 : index
    %c2_22 = arith.constant 2 : index
    %53 = memref.load %arg1[%c2_21, %c2_22] : memref<3x3xf32, #tpu.memory_space<smem>>
    %54 = vector.broadcast %53 : f32 to vector<1x128xf32>
    %55 = arith.mulf %3, %54 : vector<1x128xf32>
    %56 = arith.addf %52, %55 : vector<1x128xf32>
    %c2_23 = arith.constant 2 : index
    %57 = memref.load %arg2[%c2_23] : memref<3xf32, #tpu.memory_space<smem>>
    %58 = vector.broadcast %57 : f32 to vector<1x128xf32>
    %59 = arith.addf %56, %58 : vector<1x128xf32>
    %cst_24 = arith.constant 0.000000e+00 : f32
    %60 = vector.broadcast %cst_24 : f32 to vector<1x128xf32>
    %61 = arith.maximumf %59, %60 : vector<1x128xf32>
    %c2_25 = arith.constant 2 : index
    %62 = memref.load %arg3[%c2_25] : memref<3xf32, #tpu.memory_space<smem>>
    %63 = vector.broadcast %62 : f32 to vector<1x128xf32>
    %64 = arith.mulf %63, %61 : vector<1x128xf32>
    %65 = arith.addf %45, %64 : vector<1x128xf32>
    %c0_26 = arith.constant 0 : index
    %c0_27 = arith.constant 0 : index
    %66 = vector.load %arg6[%c0_26, %c0_27] : memref<1x128xf32, #tpu.memory_space<vmem>>, vector<1x128xf32>
    tpu.vector_store %arg6[%c0_26, %c0_27], %65 {strides = array<i32>} : memref<1x128xf32, #tpu.memory_space<vmem>>, vector<1x128xf32>,
    return
  }
  func.func @transform_0(%arg0: i32) -> (i32, i32) {
    %c0_i32 = arith.constant 0 : i32
    %c0_i32_0 = arith.constant 0 : i32
    %c0_i32_1 = arith.constant 0 : i32
    return %c0_i32, %c0_i32_0 : i32, i32
  }
  func.func @transform_1(%arg0: i32) -> i32 {
    %c0_i32 = arith.constant 0 : i32
    %c0_i32_0 = arith.constant 0 : i32
    return %c0_i32 : i32
  }
  func.func @transform_2(%arg0: i32) -> i32 {
    %c0_i32 = arith.constant 0 : i32
    %c0_i32_0 = arith.constant 0 : i32
    return %c0_i32 : i32
  }
  func.func @transform_3(%arg0: i32) -> i32 {
    %c0_i32 = arith.constant 0 : i32
    %c0_i32_0 = arith.constant 0 : i32
    return %c0_i32 : i32
  }
  func.func @transform_4(%arg0: i32) -> (i32, i32) {
    %c0_i32 = arith.constant 0 : i32
    %c0_i32_0 = arith.constant 0 : i32
    return %c0_i32, %arg0 : i32, i32
  }
  func.func @transform_5(%arg0: i32) -> (i32, i32) {
    %c0_i32 = arith.constant 0 : i32
    %c0_i32_0 = arith.constant 0 : i32
    return %c0_i32, %arg0 : i32, i32
  }
}

</mosaic_0001>

<llo_original>
// kernel: tpu_custom_call.1
$region0: #{tpu_custom_call.1}
  #allocation0 [shape = 'u32[]', space=smem, size = 0x4, offset = 0x4, fixed_abs, tag = 'smem constant byte address 0x4 - core index']
  #allocation1 [shape = 'u32[144,128]{1,0:T(1,128)}', space=vmem, size = 0x12000, scoped, tag = 'internal scratch']
  #allocation2 [shape = 'f32[1]{0:T(128)S(6)}', space=smem, size = 0x200, scoped, tag = 'scoped memory for tpu_custom_call.1']
  %s0 = inlined_call_operand.hbm [shape: f32[3,3], index: 0, kind: input, shape index: {}]
  %s1 = inlined_call_operand.vmem [shape: f32[3], index: 1, kind: input, shape index: {}]
  %s2 = inlined_call_operand.vmem [shape: f32[3], index: 2, kind: input, shape index: {}]
  %s3 = inlined_call_operand.<no memory space> [shape: f32[1], index: 3, kind: input, shape index: {}]
  %s4 = inlined_call_operand.vmem [shape: f32[3,128], index: 4, kind: input, shape index: {}]
  %s5 = inlined_call_operand.hbm [shape: f32[1,128], index: 5, kind: output, shape index: {}]
  %s6 = sld [smem:[#allocation0]]
  $region42: #{tpu_custom_call.1} parent=0
    _
  %s8 = ssub.s32 1, %s6
  %s9 = scalar_select 0, %s8, %s6
  %10 = sst [smem:[#allocation2]] %s3
  $region1: #{tpu_custom_call.1} parent=0
    #allocation3 [shape = 'u8[2048]{0}', space=smem, size = 0x800, scoped, tag = 'input window, operand 0, single buffered']
    #allocation4 [shape = 's32[1]{0}', space=sflag, size = 0x4, scoped, tag = 'scoped memory for tpu_custom_call.1']
    #allocation5 [shape = 's32[1]{0}', space=sflag, size = 0x4, scoped, tag = 'scoped memory for tpu_custom_call.1']
    #allocation6 [shape = 's32[1]{0}', space=sflag, size = 0x4, scoped, tag = 'scoped memory for tpu_custom_call.1']
    #allocation7 [shape = 'u8[512]{0}', space=smem, size = 0x200, scoped, tag = 'input window, operand 1, single buffered']
    #allocation8 [shape = 'u8[512]{0}', space=smem, size = 0x200, scoped, tag = 'input window, operand 2, single buffered']
    #allocation9 [shape = 's32[1]{0}', space=sflag, size = 0x4, scoped, tag = 'scoped memory for tpu_custom_call.1']
    #allocation10 [shape = 'u8[512]{0}', space=vmem, size = 0x400, scoped, tag = 'output window, operand 0, single buffered']
    %11 = vsyncpa [#allocation5], 0
    %12 = vsyncpa [#allocation6], 0
    %13 = vsyncpa [#allocation9], 0
    %14 = vsyncpa [#allocation4], 0
    // Predicated region
    $region2: #{tpu_custom_call.1} parent=1 // pred_check
      _
    $region3: #{tpu_custom_call.1} parent=1 // pred_check_branch
      %16 = sbr.rel (0) target = $region5
    $region4: #{tpu_custom_call.1} parent=1 // pred_region
      %s18 = ssub.s32 64, 64
      %19 = vsyncadd [#allocation5], %s18
      %22 = dma.hbm_to_smem %s0, 64, [#allocation3], [#allocation5]
    $region5: #{tpu_custom_call.1} parent=1 // pred_fallthru
      _
    // Predicated region
    $region6: #{tpu_custom_call.1} parent=1 // pred_check
      _
    $region7: #{tpu_custom_call.1} parent=1 // pred_check_branch
      %24 = sbr.rel (0) target = $region9
    $region8: #{tpu_custom_call.1} parent=1 // pred_region
      %s26 = ssub.s32 16, 16
      %27 = vsyncadd [#allocation6], %s26
      %s29 = sshll.u32 %s1, 4
      %s30 = int_to_ptr.vmem [resolvable:$true] %s29
      %32 = dma.vmem_to_smem %s30, 16, [#allocation7], [#allocation6]
    $region9: #{tpu_custom_call.1} parent=1 // pred_fallthru
      _
    // Predicated region
    $region10: #{tpu_custom_call.1} parent=1 // pred_check
      _
    $region11: #{tpu_custom_call.1} parent=1 // pred_check_branch
      %34 = sbr.rel (0) target = $region13
    $region12: #{tpu_custom_call.1} parent=1 // pred_region
      %s36 = ssub.s32 16, 16
      %37 = vsyncadd [#allocation9], %s36
      %s39 = sshll.u32 %s2, 4
      %s40 = int_to_ptr.vmem [resolvable:$true] %s39
      %42 = dma.vmem_to_smem %s40, 16, [#allocation8], [#allocation9]
    $region13: #{tpu_custom_call.1} parent=1 // pred_fallthru
      _
    // Predicated region
    $region14: #{tpu_custom_call.1} parent=1 // pred_check
      _
    $region15: #{tpu_custom_call.1} parent=1 // pred_check_branch
      %44 = sbr.rel (0) target = $region17
    $region16: #{tpu_custom_call.1} parent=1 // pred_region
      _
    $region17: #{tpu_custom_call.1} parent=1 // pred_fallthru
      _
    // Predicated region
    $region18: #{tpu_custom_call.1} parent=1 // pred_check
      _
    $region19: #{tpu_custom_call.1} parent=1 // pred_check_branch
      %46 = sbr.rel (0) target = $region21
    $region20: #{tpu_custom_call.1} parent=1 // pred_region
      _
    $region21: #{tpu_custom_call.1} parent=1 // pred_fallthru
      _
    // Predicated region
    $region22: #{tpu_custom_call.1} parent=1 // pred_check
      _
    $region23: #{tpu_custom_call.1} parent=1 // pred_check_branch
      %48 = sbr.rel (0) target = $region25
    $region24: #{tpu_custom_call.1} parent=1 // pred_region
      %49 = dma.done [#allocation5], 64
    $region25: #{tpu_custom_call.1} parent=1 // pred_fallthru
      _
    // Predicated region
    $region26: #{tpu_custom_call.1} parent=1 // pred_check
      _
    $region27: #{tpu_custom_call.1} parent=1 // pred_check_branch
      %51 = sbr.rel (0) target = $region29
    $region28: #{tpu_custom_call.1} parent=1 // pred_region
      %52 = dma.done [#allocation6], 16
    $region29: #{tpu_custom_call.1} parent=1 // pred_fallthru
      _
    // Predicated region
    $region30: #{tpu_custom_call.1} parent=1 // pred_check
      _
    $region31: #{tpu_custom_call.1} parent=1 // pred_check_branch
      %54 = sbr.rel (0) target = $region33
    $region32: #{tpu_custom_call.1} parent=1 // pred_region
      %55 = dma.done [#allocation9], 16
    $region33: #{tpu_custom_call.1} parent=1 // pred_fallthru
      _
    %56 = sfence
    %v57 = vld [vmem:[%s4] sm:$0x7]
    %s58 = sld [smem:[#allocation2]]
    %v59 = vstv %s58
    %s60 = sld [smem:[#allocation3]]
    %v61 = vstv %s60
    %v62 = vmul.f32 %v57, %v61
    %s63 = sld [smem:[#allocation3 + $0x80]]
    %v64 = vstv %s63
    %v65 = vmul.f32 %v57, %v64
    %v67 = vrot.slane %v65, 1
    %v69 = vadd.f32 %v62, %v67
    %s70 = sld [smem:[#allocation3 + $0x100]]
    %v71 = vstv %s70
    %v72 = vmul.f32 %v57, %v71
    %v74 = vrot.slane %v72, 2
    %v76 = vadd.f32 %v69, %v74
    %s77 = sld [smem:[#allocation7]]
    %v78 = vstv %s77
    %v79 = vadd.f32 %v76, %v78
    %v80 = vmax.f32 %v79, 0.0
    %s81 = sld [smem:[#allocation8]]
    %v82 = vstv %s81
    %v83 = vmul.f32 %v82, %v80
    %v84 = vadd.f32 %v59, %v83
    %s85 = sld [smem:[#allocation3 + $0x1]]
    %v86 = vstv %s85
    %v87 = vmul.f32 %v57, %v86
    %s88 = sld [smem:[#allocation3 + $0x81]]
    %v89 = vstv %s88
    %v90 = vmul.f32 %v57, %v89
    %v92 = vrot.slane %v90, 1
    %v94 = vadd.f32 %v87, %v92
    %s95 = sld [smem:[#allocation3 + $0x101]]
    %v96 = vstv %s95
    %v97 = vmul.f32 %v57, %v96
    %v99 = vrot.slane %v97, 2
    %v101 = vadd.f32 %v94, %v99
    %s102 = sld [smem:[#allocation7 + $0x1]]
    %v103 = vstv %s102
    %v104 = vadd.f32 %v101, %v103
    %v105 = vmax.f32 %v104, 0.0
    %s106 = sld [smem:[#allocation8 + $0x1]]
    %v107 = vstv %s106
    %v108 = vmul.f32 %v107, %v105
    %v109 = vadd.f32 %v84, %v108
    %s110 = sld [smem:[#allocation3 + $0x2]]
    %v111 = vstv %s110
    %v112 = vmul.f32 %v57, %v111
    %s113 = sld [smem:[#allocation3 + $0x82]]
    %v114 = vstv %s113
    %v115 = vmul.f32 %v57, %v114
    %v117 = vrot.slane %v115, 1
    %v119 = vadd.f32 %v112, %v117
    %s120 = sld [smem:[#allocation3 + $0x102]]
    %v121 = vstv %s120
    %v122 = vmul.f32 %v57, %v121
    %v124 = vrot.slane %v122, 2
    %v126 = vadd.f32 %v119, %v124
    %s127 = sld [smem:[#allocation7 + $0x2]]
    %v128 = vstv %s127
    %v129 = vadd.f32 %v126, %v128
    %v130 = vmax.f32 %v129, 0.0
    %s131 = sld [smem:[#allocation8 + $0x2]]
    %v132 = vstv %s131
    %v133 = vmul.f32 %v132, %v130
    %v134 = vadd.f32 %v109, %v133
    %135 = vst [vmem:[#allocation10] sm:$0x1] %v134
    // Predicated region
    $region34: #{tpu_custom_call.1} parent=1 // pred_check
      _
    $region35: #{tpu_custom_call.1} parent=1 // pred_check_branch
      %137 = sbr.rel (0) target = $region37
    $region36: #{tpu_custom_call.1} parent=1 // pred_region
      %s139 = ssub.s32 16, 16
      %140 = vsyncadd [#allocation4], %s139
      %s142 = sshll.u32 [#allocation10], 4
      %s143 = int_to_ptr.vmem [resolvable:$true] %s142
      %145 = dma.vmem_to_hbm [thread:$0]  %s143, 16, %s5, [#allocation4]
    $region37: #{tpu_custom_call.1} parent=1 // pred_fallthru
      _
    // Predicated region
    $region38: #{tpu_custom_call.1} parent=1 // pred_check
      _
    $region39: #{tpu_custom_call.1} parent=1 // pred_check_branch
      %147 = sbr.rel (0) target = $region41
    $region40: #{tpu_custom_call.1} parent=1 // pred_region
      %148 = dma.done [#allocation4], 16
    $region41: #{tpu_custom_call.1} parent=1 // pred_fallthru
      _
    %149 = vsyncpa [#allocation4], 1
    %150 = vsyncpa [#allocation5], 1
    %151 = vsyncpa [#allocation6], 1
    %152 = vsyncpa [#allocation9], 1

</llo_original>
